<compile_context>
chip_gen: v7x
topology: tpu7x:2x2x1
jax: 0.10.0
libtpu: 0.0.40
codegen_flags: <defaults>
</compile_context>

<pallas_src>
import functools

import jax
import jax.numpy as jnp
from jax.experimental import pallas as pl
from jax.experimental.pallas import tpu as pltpu


def _flatten_ce_kernel(pred_ref, label_ref, out_ref, acc_ref, *,
                       n_valid, tile_n, inv_n):
    # pred_ref : (TILE_N, C) input dtype, VMEM (auto-pipelined tile)
    # label_ref: (TILE_N, 1) int32,       VMEM
    # out_ref  : (1, 1)      float32,     SMEM (scalar loss, resident)
    # acc_ref  : (1, 1)      float32,     SMEM scratch (running sum)
    i = pl.program_id(0)

    @pl.when(i == 0)
    def _init():
        acc_ref[0, 0] = jnp.float32(0.0)

    x = pred_ref[...]                                    # keep input dtype
    labels = label_ref[...]                              # (TILE_N, 1) int32

    # Numerically-stable logsumexp. max/sub/exp stay in the input dtype
    # (bf16 goes through the EUP at 2x rate on v6e/v7x); the row sums and
    # lse are accumulated in f32.
    m = jnp.max(x, axis=-1, keepdims=True)               # (TILE_N, 1)
    e = jnp.exp(x - m)                                    # (TILE_N, C) EUP
    s = jnp.sum(e.astype(jnp.float32), axis=-1, keepdims=True)
    lse = m.astype(jnp.float32) + jnp.log(s)              # (TILE_N, 1) f32

    # Gather the logit at the label index: single select-and-reduce
    # (no one-hot cast + multiply).
    col = jax.lax.broadcasted_iota(jnp.int32, x.shape, 1)
    picked = jnp.sum(
        jnp.where(col == labels, x, jnp.zeros_like(x)).astype(jnp.float32),
        axis=-1, keepdims=True)                           # (TILE_N, 1) f32

    # Mask padded tail rows (global row index >= N) so they contribute 0.
    row = jax.lax.broadcasted_iota(jnp.int32, (tile_n, 1), 0) + i * tile_n
    per_row = jnp.where(row < n_valid, lse - picked, 0.0)

    acc_ref[0, 0] += jnp.sum(per_row)

    @pl.when(i == pl.num_programs(0) - 1)
    def _finalize():
        # Mean hoisted out of the loop: one multiply by 1/N at the end.
        out_ref[0, 0] = acc_ref[0, 0] * jnp.float32(inv_n)


def flatten_loss(pred: jax.Array, label: jax.Array, *, tile_n=None) -> jax.Array:
    """FlattenLoss(nn.CrossEntropyLoss()) forward.

    pred : (B, S, C) float logits (f32 or bf16)
    label: (B, S)    int class ids
    Returns the scalar float32 mean cross-entropy loss.
    """
    B, S, C = pred.shape
    N = B * S
    pred_flat = pred.reshape(N, C)                        # pred.flatten(0, 1)
    label_flat = label.reshape(N, 1).astype(jnp.int32)    # label.flatten(0, 1)

    # ---- pick a row tile: ~2 MiB of logits per step, sublane-aligned -------
    itemsize = pred_flat.dtype.itemsize
    row_align = 8 if itemsize >= 4 else (16 if itemsize == 2 else 32)
    if tile_n is None:
        target_bytes = 2 * 1024 * 1024
        tile_n = max(row_align,
                     (target_bytes // max(1, C * itemsize)) // row_align * row_align)
        tile_n = min(tile_n, 1024)
    else:
        tile_n = max(row_align, (int(tile_n) // row_align) * row_align)
    # Don't pad tiny problems past the next sublane multiple.
    tile_n = min(tile_n, pl.cdiv(N, row_align) * row_align)

    num_tiles = pl.cdiv(N, tile_n)
    n_pad = num_tiles * tile_n
    if n_pad != N:
        pred_flat = jnp.pad(pred_flat, ((0, n_pad - N), (0, 0)))
        label_flat = jnp.pad(label_flat, ((0, n_pad - N), (0, 0)))

    # Double-buffered input tiles + slack; stays inside v7x's 64 MiB VMEM.
    step_bytes = tile_n * C * itemsize + tile_n * 4
    vmem_limit = int(min(48 * 1024 * 1024, max(8 * 1024 * 1024, 4 * step_bytes)))

    kernel = functools.partial(
        _flatten_ce_kernel, n_valid=N, tile_n=tile_n, inv_n=1.0 / N)

    out = pl.pallas_call(
        kernel,
        out_shape=jax.ShapeDtypeStruct((1, 1), jnp.float32),
        grid=(num_tiles,),
        in_specs=[
            pl.BlockSpec((tile_n, C), lambda i: (i, 0)),
            pl.BlockSpec((tile_n, 1), lambda i: (i, 0)),
        ],
        out_specs=pl.BlockSpec(memory_space=pltpu.SMEM),
        scratch_shapes=[pltpu.SMEM((1, 1), jnp.float32)],
        compiler_params=pltpu.CompilerParams(
            dimension_semantics=("arbitrary",),
            vmem_limit_bytes=vmem_limit),
    )(pred_flat, label_flat)
    return out[0, 0]


def _reference(pred, label):
    # pure-JAX reference for sanity checking
    B, S, C = pred.shape
    p = pred.reshape(B * S, C).astype(jnp.float32)
    l = label.reshape(B * S)
    logz = jax.scipy.special.logsumexp(p, axis=-1)
    picked = jnp.take_along_axis(p, l[:, None], axis=-1)[:, 0]
    return jnp.mean(logz - picked)


if __name__ == "__main__":
    key = jax.random.PRNGKey(0)
    k1, k2, k3, k4 = jax.random.split(key, 4)

    # Case 1: default tiling (single tile at this small shape).
    B, S, C = 2, 8, 32
    pred = jax.random.normal(k1, (B, S, C), dtype=jnp.float32)
    label = jax.random.randint(k2, (B, S), minval=0, maxval=C, dtype=jnp.int32)
    loss = flatten_loss(pred, label)
    jax.block_until_ready(loss)
    ref = _reference(pred, label)
    assert jnp.allclose(loss, ref, atol=1e-5, rtol=1e-5), (loss, ref)

    # Case 2: force a small tile so the multi-step grid, accumulator and
    # tail-row masking paths are exercised (N = 15 -> 2 tiles of 8, 1 pad row).
    B2, S2, C2 = 3, 5, 48
    pred2 = jax.random.normal(k3, (B2, S2, C2), dtype=jnp.float32)
    label2 = jax.random.randint(k4, (B2, S2), minval=0, maxval=C2, dtype=jnp.int32)
    loss2 = flatten_loss(pred2, label2, tile_n=8)
    jax.block_until_ready(loss2)
    ref2 = _reference(pred2, label2)
    assert jnp.allclose(loss2, ref2, atol=1e-5, rtol=1e-5), (loss2, ref2)

    print("KERNEL_OK")
</pallas_src>

<mosaic_0001>
module attributes {stable_mosaic.version = 11 : i64} {
  func.func @_flatten_ce_kernel(%arg0: i32, %arg1: memref<16x32xf32, #tpu.memory_space<vmem>>, %arg2: memref<16x1xi32, #tpu.memory_space<vmem>>, %arg3: memref<1x1xf32, #tpu.memory_space<smem>>, %arg4: memref<1x1xf32, #tpu.memory_space<smem>>) attributes {dimension_semantics = [#tpu.dimension_semantics<arbitrary>], iteration_bounds = array<i64: 1>, scalar_prefetch = 0 : i64, scratch_operands = 1 : i64, tpu.core_type = #tpu.core_type<tc>, window_params = [{transform_indices = @transform_0, window_bounds = array<i64: 16, 32>}, {transform_indices = @transform_1, window_bounds = array<i64: 16, 1>}, {transform_indices = @transform_2, window_bounds = array<i64: 1, 1>}]} {
    %c0_i32 = arith.constant 0 : i32
    %0 = arith.cmpi eq, %arg0, %c0_i32 : i32
    %1 = arith.extui %0 : i1 to i32
    %c0_i32_0 = arith.constant 0 : i32
    %2 = arith.cmpi ne, %1, %c0_i32_0 : i32
    scf.if %2 {
      %cst_16 = arith.constant 0.000000e+00 : f32
      %c0_17 = arith.constant 0 : index
      %c0_18 = arith.constant 0 : index
      %40 = memref.load %arg4[%c0_17, %c0_18] : memref<1x1xf32, #tpu.memory_space<smem>>
      memref.store %cst_16, %arg4[%c0_17, %c0_18] : memref<1x1xf32, #tpu.memory_space<smem>>
    } else {
    }
    %c0 = arith.constant 0 : index
    %c0_1 = arith.constant 0 : index
    %3 = vector.load %arg1[%c0, %c0_1] : memref<16x32xf32, #tpu.memory_space<vmem>>, vector<16x32xf32>
    %c0_2 = arith.constant 0 : index
    %c0_3 = arith.constant 0 : index
    %4 = vector.load %arg2[%c0_2, %c0_3] : memref<16x1xi32, #tpu.memory_space<vmem>>, vector<16x1xi32>
    %cst = arith.constant dense<0xFF800000> : vector<16xf32>
    %5 = vector.multi_reduction <maximumf>, %3, %cst [1] : vector<16x32xf32> to vector<16xf32>
    %6 = vector.shape_cast %5 : vector<16xf32> to vector<16x1xf32>
    %7 = vector.broadcast %6 : vector<16x1xf32> to vector<16x32xf32>
    %8 = arith.subf %3, %7 : vector<16x32xf32>
    %9 = math.exp %8 : vector<16x32xf32>
    %cst_4 = arith.constant dense<0.000000e+00> : vector<16xf32>
    %10 = vector.multi_reduction <add>, %9, %cst_4 [1] : vector<16x32xf32> to vector<16xf32>
    %11 = vector.shape_cast %10 : vector<16xf32> to vector<16x1xf32>
    %12 = math.log %11 : vector<16x1xf32>
    %13 = arith.addf %6, %12 : vector<16x1xf32>
    %14 = tpu.iota {dimensions = array<i32: 1>} : vector<16x32xi32>
    %15 = vector.broadcast %4 : vector<16x1xi32> to vector<16x32xi32>
    %16 = arith.cmpi eq, %14, %15 : vector<16x32xi32>
    %cst_5 = arith.constant 0.000000e+00 : f32
    %17 = vector.broadcast %cst_5 : f32 to vector<16x32xf32>
    %18 = arith.select %16, %3, %17 : vector<16x32xi1>, vector<16x32xf32>
    %cst_6 = arith.constant dense<0.000000e+00> : vector<16xf32>
    %19 = vector.multi_reduction <add>, %18, %cst_6 [1] : vector<16x32xf32> to vector<16xf32>
    %20 = vector.shape_cast %19 : vector<16xf32> to vector<16x1xf32>
    %21 = tpu.iota {dimensions = array<i32: 0>} : vector<16x1xi32>
    %c16_i32 = arith.constant 16 : i32
    %22 = arith.muli %arg0, %c16_i32 : i32
    %23 = vector.broadcast %22 : i32 to vector<16x1xi32>
    %24 = arith.addi %21, %23 : vector<16x1xi32>
    %c16_i32_7 = arith.constant 16 : i32
    %25 = vector.broadcast %c16_i32_7 : i32 to vector<16x1xi32>
    %26 = arith.cmpi slt, %24, %25 : vector<16x1xi32>
    %27 = arith.subf %13, %20 : vector<16x1xf32>
    %cst_8 = arith.constant 0.000000e+00 : f32
    %28 = vector.broadcast %cst_8 : f32 to vector<16x1xf32>
    %29 = arith.select %26, %27, %28 : vector<16x1xi1>, vector<16x1xf32>
    %c0_9 = arith.constant 0 : index
    %c0_10 = arith.constant 0 : index
    %30 = memref.load %arg4[%c0_9, %c0_10] : memref<1x1xf32, #tpu.memory_space<smem>>
    %31 = vector.shape_cast %29 : vector<16x1xf32> to vector<1x16x1xf32>
    %cst_11 = arith.constant dense<0.000000e+00> : vector<1xf32>
    %32 = vector.multi_reduction <add>, %31, %cst_11 [1, 2] : vector<1x16x1xf32> to vector<1xf32>
    %33 = vector.shape_cast %32 : vector<1xf32> to vector<1x1x1xf32>
    %34 = vector.extract %33[0, 0, 0] : f32 from vector<1x1x1xf32>
    %35 = arith.addf %30, %34 : f32
    %c0_12 = arith.constant 0 : index
    %c0_13 = arith.constant 0 : index
    %36 = memref.load %arg4[%c0_12, %c0_13] : memref<1x1xf32, #tpu.memory_space<smem>>
    memref.store %35, %arg4[%c0_12, %c0_13] : memref<1x1xf32, #tpu.memory_space<smem>>
    %c0_i32_14 = arith.constant 0 : i32
    %37 = arith.cmpi eq, %arg0, %c0_i32_14 : i32
    %38 = arith.extui %37 : i1 to i32
    %c0_i32_15 = arith.constant 0 : i32
    %39 = arith.cmpi ne, %38, %c0_i32_15 : i32
    scf.if %39 {
      %c0_16 = arith.constant 0 : index
      %c0_17 = arith.constant 0 : index
      %40 = memref.load %arg4[%c0_16, %c0_17] : memref<1x1xf32, #tpu.memory_space<smem>>
      %cst_18 = arith.constant 6.250000e-02 : f32
      %41 = arith.mulf %40, %cst_18 : f32
      %c0_19 = arith.constant 0 : index
      %c0_20 = arith.constant 0 : index
      %42 = memref.load %arg3[%c0_19, %c0_20] : memref<1x1xf32, #tpu.memory_space<smem>>
      memref.store %41, %arg3[%c0_19, %c0_20] : memref<1x1xf32, #tpu.memory_space<smem>>
    } else {
    }
    return
  }
  func.func @transform_0(%arg0: i32) -> (i32, i32) {
    %c0_i32 = arith.constant 0 : i32
    %c0_i32_0 = arith.constant 0 : i32
    return %arg0, %c0_i32 : i32, i32
  }
  func.func @transform_1(%arg0: i32) -> (i32, i32) {
    %c0_i32 = arith.constant 0 : i32
    %c0_i32_0 = arith.constant 0 : i32
    return %arg0, %c0_i32 : i32, i32
  }
  func.func @transform_2(%arg0: i32) -> (i32, i32) {
    %c0_i32 = arith.constant 0 : i32
    %c0_i32_0 = arith.constant 0 : i32
    %c0_i32_1 = arith.constant 0 : i32
    return %c0_i32, %c0_i32_0 : i32, i32
  }
}

</mosaic_0001>

<llo_original>
// kernel: tpu_custom_call.1
$region0: #{tpu_custom_call.1}
  #allocation0 [shape = 'u32[]', space=smem, size = 0x4, offset = 0x4, fixed_abs, tag = 'smem constant byte address 0x4 - core index']
  #allocation1 [shape = 'u32[144,128]{1,0:T(1,128)}', space=vmem, size = 0x12000, scoped, tag = 'internal scratch']
  #allocation2 [shape = 'f32[1,1]{1,0:T(1,128)}', space=smem, size = 0x200, scoped, tag = 'scratch operand']
  %s0 = inlined_call_operand.vmem [shape: f32[16,32], index: 0, kind: input, shape index: {}]
  %s1 = inlined_call_operand.vmem [shape: s32[16,1], index: 1, kind: input, shape index: {}]
  %s2 = inlined_call_operand.hbm [shape: f32[1,1], index: 2, kind: output, shape index: {}]
  %s3 = sld [smem:[#allocation0]]
  $region26: #{tpu_custom_call.1} parent=0
    _
  %s5 = ssub.s32 1, %s3
  %s6 = scalar_select 0, %s5, %s3
  $region1: #{tpu_custom_call.1} parent=0
    #allocation3 [shape = 'u8[512]{0}', space=smem, size = 0x200, scoped, tag = 'output window, operand 0, single buffered']
    #allocation4 [shape = 's32[1]{0}', space=sflag, size = 0x4, scoped, tag = 'scoped memory for tpu_custom_call.1']
    %7 = vsyncpa [#allocation4], 0
    // Predicated region
    $region2: #{tpu_custom_call.1} parent=1 // pred_check
      _
    $region3: #{tpu_custom_call.1} parent=1 // pred_check_branch
      %9 = sbr.rel (0) target = $region5
    $region4: #{tpu_custom_call.1} parent=1 // pred_region
      _
    $region5: #{tpu_custom_call.1} parent=1 // pred_fallthru
      _
    // Predicated region
    $region6: #{tpu_custom_call.1} parent=1 // pred_check
      _
    $region7: #{tpu_custom_call.1} parent=1 // pred_check_branch
      %11 = sbr.rel (0) target = $region9
    $region8: #{tpu_custom_call.1} parent=1 // pred_region
      _
    $region9: #{tpu_custom_call.1} parent=1 // pred_fallthru
      _
    %p12 = scmp.eq.s32.totalorder 0, 0
    // Predicated region
    $region10: #{tpu_custom_call.1} parent=1 // pred_check
      %p13 = pneg %p12
    $region11: #{tpu_custom_call.1} parent=1 // pred_check_branch
      %15 = sbr.rel (%p13) target = $region13
    $region12: #{tpu_custom_call.1} parent=1 // pred_region
      %s16 = scalar_lea.smem [#allocation2], 0
      %17 = sst [smem:[%s16]] 0.0
    $region13: #{tpu_custom_call.1} parent=1 // pred_fallthru
      _
    %v18 = vld [vmem:[%s0] sm:$0xff]
    %v19 = vld [vmem:[%s0 + $0x8] sm:$0xff]
    %v20 = vld [vmem:[%s1] sm:$0xff]
    %v21 = vld [vmem:[%s1 + $0x8] sm:$0xff]
    %vm22 = vcmask 261120
    %v23 = vsel %vm22, %v18, -inf
    %24 = vmax.xlane.f32.xlu0 %v23
    %v25 = vpop.xlane.xlu0 %24
    %v26 = vsel %vm22, %v19, -inf
    %27 = vmax.xlane.f32.xlu0 %v26
    %v28 = vpop.xlane.xlu0 %27
    %v29 = vsub.f32 %v18, %v25
    %v30 = vsub.f32 %v19, %v28
    %v31 = vmul.f32 %v29, 1.442695
    %v32 = vpow.pop %v31
    %v33 = vmul.f32 %v30, 1.442695
    %v34 = vpow.pop %v33
    %v35 = vsel %vm22, %v32, 0.0
    %36 = vadd.xlane.f32.xlu0 %v35
    %v37 = vpop.xlane.xlu0 %36
    %v38 = vsel %vm22, %v34, 0.0
    %39 = vadd.xlane.f32.xlu0 %v38
    %v40 = vpop.xlane.xlu0 %39
    %v41 = vlog2.pop %v37
    %v42 = vmul.f32 %v41, 0.6931472
    %v43 = vlog2.pop %v40
    %v44 = vmul.f32 %v43, 0.6931472
    %v45 = vadd.f32 %v25, %v42
    %v46 = vadd.f32 %v28, %v44
    %v47 = vlaneseq
    %v48 = vand.u32 %v47, 127
    %49 = vset.pattern.permute.xlu0 0
    %50 = vperm.xlu0 %49, %v20
    %v51 = vpop.permute.xlu0 %50
    %52 = vset.pattern.permute.xlu0 0
    %53 = vperm.xlu0 %52, %v21
    %v54 = vpop.permute.xlu0 %53
    %vm55 = vcmp.eq.s32.totalorder %v48, %v51
    %vm56 = vcmp.eq.s32.totalorder %v48, %v54
    %v57 = vsel %vm55, %v18, 0.0
    %v58 = vsel %vm56, %v19, 0.0
    %v59 = vsel %vm22, %v57, 0.0
    %60 = vadd.xlane.f32.xlu0 %v59
    %v61 = vpop.xlane.xlu0 %60
    %v62 = vsel %vm22, %v58, 0.0
    %63 = vadd.xlane.f32.xlu0 %v62
    %v64 = vpop.xlane.xlu0 %63
    %v65 = vlaneseq
    %v66 = vshrl.u32 %v65, 7
    %v67 = vadd.s32 %v66, 8
    %s68 = smul.u32 0, 16
    %v69 = vstv %s68
    %v70 = vadd.s32 %v66, %v69
    %v71 = vadd.s32 %v67, %v69
    %vm72 = vcmp.lt.s32.totalorder %v70, 16
    %vm73 = vcmp.lt.s32.totalorder %v71, 16
    %v74 = vsub.f32 %v45, %v61
    %v75 = vsub.f32 %v46, %v64
    %v76 = vsel %vm72, %v74, 0.0
    %v77 = vsel %vm73, %v75, 0.0
    %s78 = sld [smem:[#allocation2]]
    %vm79 = vcmask 7168
    %v80 = vsel %vm79, %v76, 0.0
    %v81 = vsel %vm79, %v77, 0.0
    %v82 = vadd.f32 %v80, %v81
    %83 = vadd.xlane.f32.xlu0 %v82
    %v84 = vpop.xlane.xlu0 %83
    %v85 = vrot.slane %v84, 4
    %v86 = vadd.f32 %v84, %v85
    %v87 = vrot.slane %v86, 2
    %v88 = vadd.f32 %v86, %v87
    %v89 = vrot.slane %v88, 1
    %v90 = vadd.f32 %v88, %v89
    %s91 = vtos %v90
    %s92 = sadd.f32 %s78, %s91
    %s93 = scalar_lea.smem [#allocation2], 0
    %94 = sst [smem:[%s93]] %s92
    // Predicated region
    $region14: #{tpu_custom_call.1} parent=1 // pred_check
      %p95 = pneg %p12
    $region15: #{tpu_custom_call.1} parent=1 // pred_check_branch
      %97 = sbr.rel (%p95) target = $region17
    $region16: #{tpu_custom_call.1} parent=1 // pred_region
      %s98 = sld [smem:[#allocation2]]
      %s99 = smul.f32 %s98, 0.0625
      %s100 = scalar_lea.smem [#allocation3], 0
      %101 = sst [smem:[%s100]] %s99
    $region17: #{tpu_custom_call.1} parent=1 // pred_fallthru
      _
    // Predicated region
    $region18: #{tpu_custom_call.1} parent=1 // pred_check
      _
    $region19: #{tpu_custom_call.1} parent=1 // pred_check_branch
      %103 = sbr.rel (0) target = $region21
    $region20: #{tpu_custom_call.1} parent=1 // pred_region
      %s105 = ssub.s32 16, 16
      %106 = vsyncadd [#allocation4], %s105
      %109 = dma.smem_to_hbm [#allocation3], 16, %s2, [#allocation4]
    $region21: #{tpu_custom_call.1} parent=1 // pred_fallthru
      _
    // Predicated region
    $region22: #{tpu_custom_call.1} parent=1 // pred_check
      _
    $region23: #{tpu_custom_call.1} parent=1 // pred_check_branch
      %111 = sbr.rel (0) target = $region25
    $region24: #{tpu_custom_call.1} parent=1 // pred_region
      %112 = dma.done [#allocation4], 16
    $region25: #{tpu_custom_call.1} parent=1 // pred_fallthru
      _
    %113 = sfence
    %114 = vsyncpa [#allocation4], 1

</llo_original>
